<compile_context>
chip_gen: v6e
topology: v6e:2x2x1
jax: 0.10.0
libtpu: 0.0.40
codegen_flags: <defaults>
</compile_context>

<pallas_src>
import numpy as np
import jax
import jax.numpy as jnp
from jax.experimental import pallas as pl
from jax.experimental.pallas import tpu as pltpu

HIDDEN = 256
LANE = 128
SUBLANE = 8          # f32 sublane granularity (x tile is f32 in VMEM)
SUBLANE_BF16 = 16    # preferred tile-row multiple (bf16 packs 16 sublanes)


def _round_up(n, m):
    return ((n + m - 1) // m) * m


def qnetwork_kernel(x_ref, w1_ref, b1_ref, w2_ref, b2_ref, out_ref):
    a = out_ref.shape[-1]                      # true action_size (static)
    # In-kernel f32 -> bf16 cast of the activation tile (VPU, hidden under the
    # matmul); weights already arrive in the MXU input dtype.
    xb = x_ref[...].astype(w1_ref.dtype)
    # fc1: [TB, S] @ [S, 256] -> f32 accumulate; bias + ReLU stay f32 (VPU).
    h = jnp.dot(xb, w1_ref[...], preferred_element_type=jnp.float32)
    h = jnp.maximum(h + b1_ref[...], 0.0)
    # fc2: [TB, 256] @ [256, A_pad] -> f32 accumulate. RHS is lane-dense
    # (padded to 128) for the MXU; only the first `a` columns are stored.
    out = jnp.dot(h.astype(w2_ref.dtype), w2_ref[...],
                  preferred_element_type=jnp.float32)
    out_ref[...] = (out[:, :a] + b2_ref[...]).astype(out_ref.dtype)


def qnetwork_forward(x, w1, b1, w2, b2, *, block_b=1024, use_bf16=True):
    """x: [B, state_size] (f32); w1: [state_size, 256]; b1: [1, 256];
    w2: [256, action_size]; b2: [1, action_size] -> [B, action_size] (f32)."""
    B, S = x.shape
    H, A = w2.shape
    assert w1.shape == (S, H) and b1.shape == (1, H) and b2.shape == (1, A)

    # ---- fc2 RHS stays lane-dense for the MXU; the OUTPUT is not padded ----
    A_pad = _round_up(A, LANE)
    if A_pad != A:
        w2 = jnp.pad(w2, ((0, 0), (0, A_pad - A)))

    # ---- batch tiling: no padding of x; ragged last block is edge-masked ----
    TB = min(block_b, _round_up(B, SUBLANE))
    if TB >= SUBLANE_BF16:
        TB = _round_up(TB, SUBLANE_BF16)
    # v7x megacore: with ("parallel",) the batch axis shards across both TCs —
    # make sure there are >= 2 grid steps when the batch is big enough to split.
    if B >= 256 and pl.cdiv(B, TB) < 2:
        TB = _round_up(pl.cdiv(B, 2), SUBLANE_BF16)
    grid = (pl.cdiv(B, TB),)

    # ---- weights are tiny: cast/pad once in the wrapper ----
    cdtype = jnp.bfloat16 if use_bf16 else jnp.float32
    xf = x.astype(jnp.float32)          # no-op for f32 inputs
    w1c = w1.astype(cdtype)
    w2c = w2.astype(cdtype)
    b1c = b1.astype(jnp.float32)
    b2c = b2.astype(jnp.float32)

    cost = pl.CostEstimate(
        flops=2 * B * (S * H + H * A_pad),
        transcendentals=0,
        bytes_accessed=(xf.size * 4
                        + w1c.size * w1c.dtype.itemsize
                        + w2c.size * w2c.dtype.itemsize
                        + b1c.size * 4 + b2c.size * 4
                        + B * A * 4),
    )

    out = pl.pallas_call(
        qnetwork_kernel,
        out_shape=jax.ShapeDtypeStruct((B, A), jnp.float32),
        grid=grid,
        in_specs=[
            pl.BlockSpec((TB, S), lambda i: (i, 0)),      # x: batch-tiled (f32)
            pl.BlockSpec((S, H), lambda i: (0, 0)),       # W1: VMEM-resident
            pl.BlockSpec((1, H), lambda i: (0, 0)),       # b1: VMEM-resident
            pl.BlockSpec((H, A_pad), lambda i: (0, 0)),   # W2: VMEM-resident
            pl.BlockSpec((1, A), lambda i: (0, 0)),       # b2: VMEM-resident
        ],
        out_specs=pl.BlockSpec((TB, A), lambda i: (i, 0)),
        compiler_params=pltpu.CompilerParams(
            dimension_semantics=("parallel",)),
        cost_estimate=cost,
    )(xf, w1c, b1c, w2c, b2c)

    return out


def init_params(key, state_size, action_size, hidden=HIDDEN):
    """Deterministic init mirroring the PyTorch module's reset_parameters().

    hidden_init() in the reference uses weight.size()[0] == out_features as
    'fan_in' (quirk of the original code) -> lim = 1/sqrt(256) for fc1 weights.
    Biases keep PyTorch's default Linear init: U(-1/sqrt(in), 1/sqrt(in)).
    """
    k1, k2, k3, k4 = jax.random.split(key, 4)
    lim1 = 1.0 / np.sqrt(hidden)
    w1 = jax.random.uniform(k1, (state_size, hidden), jnp.float32, -lim1, lim1)
    b1 = jax.random.uniform(k2, (1, hidden), jnp.float32,
                            -1.0 / np.sqrt(state_size), 1.0 / np.sqrt(state_size))
    w2 = jax.random.uniform(k3, (hidden, action_size), jnp.float32, -0.003, 0.003)
    b2 = jax.random.uniform(k4, (1, action_size), jnp.float32,
                            -1.0 / np.sqrt(hidden), 1.0 / np.sqrt(hidden))
    return w1, b1, w2, b2


def _ref_forward(x, w1, b1, w2, b2, use_bf16=True):
    """Plain-JAX reference matching the kernel's numerics (bf16 MXU inputs,
    f32 accumulation)."""
    cdtype = jnp.bfloat16 if use_bf16 else jnp.float32
    h = jnp.dot(x.astype(cdtype), w1.astype(cdtype),
                preferred_element_type=jnp.float32) + b1
    h = jnp.maximum(h, 0.0)
    return jnp.dot(h.astype(cdtype), w2.astype(cdtype),
                   preferred_element_type=jnp.float32) + b2


if __name__ == "__main__":
    # n = 8 bits -> state_size = 2n = 16, action_size = n = 8
    batch, state_size, action_size = 8, 16, 8

    key = jax.random.PRNGKey(0)
    kx, kp = jax.random.split(key)
    x = jax.random.normal(kx, (batch, state_size), jnp.float32)
    w1, b1, w2, b2 = init_params(kp, state_size, action_size)

    out = qnetwork_forward(x, w1, b1, w2, b2)
    out = jax.block_until_ready(out)
    assert out.shape == (batch, action_size)

    # Check vs. numerics-matched reference (tight) and f32 reference (loose,
    # covers bf16 input rounding).
    ref_bf16 = _ref_forward(x, w1, b1, w2, b2, use_bf16=True)
    np.testing.assert_allclose(np.asarray(out), np.asarray(ref_bf16),
                               rtol=1e-3, atol=1e-4)
    ref_f32 = jnp.maximum(x @ w1 + b1, 0.0) @ w2 + b2
    np.testing.assert_allclose(np.asarray(out), np.asarray(ref_f32),
                               rtol=5e-2, atol=1e-2)

    # Larger, non-divisible batch: exercises the ragged (edge-masked) last
    # block and the multi-step / megacore-split grid path.
    batch2 = 300
    x2 = jax.random.normal(jax.random.PRNGKey(1), (batch2, state_size), jnp.float32)
    out2 = jax.block_until_ready(qnetwork_forward(x2, w1, b1, w2, b2))
    assert out2.shape == (batch2, action_size)
    ref2 = _ref_forward(x2, w1, b1, w2, b2, use_bf16=True)
    np.testing.assert_allclose(np.asarray(out2), np.asarray(ref2),
                               rtol=1e-3, atol=1e-4)

    # Small explicit block size to force several grid steps with resident weights.
    out3 = jax.block_until_ready(
        qnetwork_forward(x2, w1, b1, w2, b2, block_b=64))
    np.testing.assert_allclose(np.asarray(out3), np.asarray(ref2),
                               rtol=1e-3, atol=1e-4)

    print("KERNEL_OK")
</pallas_src>

<mosaic_0001>
module attributes {stable_mosaic.version = 11 : i64} {
  func.func @qnetwork_kernel(%arg0: i32, %arg1: memref<8x16xf32, #tpu.memory_space<vmem>>, %arg2: memref<16x256xbf16, #tpu.memory_space<vmem>>, %arg3: memref<1x256xf32, #tpu.memory_space<vmem>>, %arg4: memref<256x128xbf16, #tpu.memory_space<vmem>>, %arg5: memref<1x8xf32, #tpu.memory_space<vmem>>, %arg6: memref<8x8xf32, #tpu.memory_space<vmem>>) attributes {dimension_semantics = [#tpu.dimension_semantics<parallel>], iteration_bounds = array<i64: 1>, scalar_prefetch = 0 : i64, scratch_operands = 0 : i64, tpu.core_type = #tpu.core_type<tc>, window_params = [{transform_indices = @transform_0, window_bounds = array<i64: 8, 16>}, {pipeline_mode = #tpu.pipeline_mode<synchronous>, transform_indices = @transform_1, window_bounds = array<i64: 16, 256>}, {pipeline_mode = #tpu.pipeline_mode<synchronous>, transform_indices = @transform_2, window_bounds = array<i64: 1, 256>}, {pipeline_mode = #tpu.pipeline_mode<synchronous>, transform_indices = @transform_3, window_bounds = array<i64: 256, 128>}, {pipeline_mode = #tpu.pipeline_mode<synchronous>, transform_indices = @transform_4, window_bounds = array<i64: 1, 8>}, {transform_indices = @transform_5, window_bounds = array<i64: 8, 8>}]} {
    %c0 = arith.constant 0 : index
    %c0_0 = arith.constant 0 : index
    %0 = vector.load %arg1[%c0, %c0_0] : memref<8x16xf32, #tpu.memory_space<vmem>>, vector<8x16xf32>
    %1 = arith.truncf %0 : vector<8x16xf32> to vector<8x16xbf16>
    %c0_1 = arith.constant 0 : index
    %c0_2 = arith.constant 0 : index
    %2 = vector.load %arg2[%c0_1, %c0_2] : memref<16x256xbf16, #tpu.memory_space<vmem>>, vector<16x256xbf16>
    %cst = arith.constant dense<0.000000e+00> : vector<8x256xf32>
    %3 = tpu.matmul %1, %2, %cst {dimension_numbers = #tpu.dot_dimension_numbers<[1], [0], [0], [1], [0, 0, 1, 1], [], []>} : vector<8x16xbf16>, vector<16x256xbf16>, vector<8x256xf32> -> vector<8x256xf32>
    %c0_3 = arith.constant 0 : index
    %c0_4 = arith.constant 0 : index
    %4 = vector.load %arg3[%c0_3, %c0_4] : memref<1x256xf32, #tpu.memory_space<vmem>>, vector<1x256xf32>
    %5 = vector.broadcast %4 : vector<1x256xf32> to vector<8x256xf32>
    %6 = arith.addf %3, %5 : vector<8x256xf32>
    %cst_5 = arith.constant 0.000000e+00 : f32
    %7 = vector.broadcast %cst_5 : f32 to vector<8x256xf32>
    %8 = arith.maximumf %6, %7 : vector<8x256xf32>
    %9 = arith.truncf %8 : vector<8x256xf32> to vector<8x256xbf16>
    %c0_6 = arith.constant 0 : index
    %c0_7 = arith.constant 0 : index
    %10 = vector.load %arg4[%c0_6, %c0_7] : memref<256x128xbf16, #tpu.memory_space<vmem>>, vector<256x128xbf16>
    %cst_8 = arith.constant dense<0.000000e+00> : vector<8x128xf32>
    %11 = tpu.matmul %9, %10, %cst_8 {dimension_numbers = #tpu.dot_dimension_numbers<[1], [0], [0], [1], [0, 0, 1, 1], [], []>} : vector<8x256xbf16>, vector<256x128xbf16>, vector<8x128xf32> -> vector<8x128xf32>
    %12 = vector.extract_strided_slice %11 {offsets = [0, 0], sizes = [8, 8], strides = [1, 1]} : vector<8x128xf32> to vector<8x8xf32>
    %c0_9 = arith.constant 0 : index
    %c0_10 = arith.constant 0 : index
    %13 = vector.load %arg5[%c0_9, %c0_10] : memref<1x8xf32, #tpu.memory_space<vmem>>, vector<1x8xf32>
    %14 = vector.broadcast %13 : vector<1x8xf32> to vector<8x8xf32>
    %15 = arith.addf %12, %14 : vector<8x8xf32>
    %c0_11 = arith.constant 0 : index
    %c0_12 = arith.constant 0 : index
    %16 = vector.load %arg6[%c0_11, %c0_12] : memref<8x8xf32, #tpu.memory_space<vmem>>, vector<8x8xf32>
    tpu.vector_store %arg6[%c0_11, %c0_12], %15 {strides = array<i32>} : memref<8x8xf32, #tpu.memory_space<vmem>>, vector<8x8xf32>,
    return
  }
  func.func @transform_0(%arg0: i32) -> (i32, i32) {
    %c0_i32 = arith.constant 0 : i32
    %c0_i32_0 = arith.constant 0 : i32
    return %arg0, %c0_i32 : i32, i32
  }
  func.func @transform_1(%arg0: i32) -> (i32, i32) {
    %c0_i32 = arith.constant 0 : i32
    %c0_i32_0 = arith.constant 0 : i32
    %c0_i32_1 = arith.constant 0 : i32
    return %c0_i32, %c0_i32_0 : i32, i32
  }
  func.func @transform_2(%arg0: i32) -> (i32, i32) {
    %c0_i32 = arith.constant 0 : i32
    %c0_i32_0 = arith.constant 0 : i32
    %c0_i32_1 = arith.constant 0 : i32
    return %c0_i32, %c0_i32_0 : i32, i32
  }
  func.func @transform_3(%arg0: i32) -> (i32, i32) {
    %c0_i32 = arith.constant 0 : i32
    %c0_i32_0 = arith.constant 0 : i32
    %c0_i32_1 = arith.constant 0 : i32
    return %c0_i32, %c0_i32_0 : i32, i32
  }
  func.func @transform_4(%arg0: i32) -> (i32, i32) {
    %c0_i32 = arith.constant 0 : i32
    %c0_i32_0 = arith.constant 0 : i32
    %c0_i32_1 = arith.constant 0 : i32
    return %c0_i32, %c0_i32_0 : i32, i32
  }
  func.func @transform_5(%arg0: i32) -> (i32, i32) {
    %c0_i32 = arith.constant 0 : i32
    %c0_i32_0 = arith.constant 0 : i32
    return %arg0, %c0_i32 : i32, i32
  }
}

</mosaic_0001>

<llo_original>
// kernel: tpu_custom_call.1
$region0: #{tpu_custom_call.1}
  #allocation0 [shape = 'u32[]', space=smem, size = 0x4, offset = 0x4, fixed_abs, tag = 'smem constant byte address 0x4 - core index']
  #allocation1 [shape = 'u32[144,128]{1,0:T(1,128)}', space=vmem, size = 0x12000, scoped, tag = 'internal scratch']
  %s0 = inlined_call_operand.hbm [shape: f32[8,16], index: 0, kind: input, shape index: {}]
  %s1 = inlined_call_operand.hbm [shape: bf16[16,256], index: 1, kind: input, shape index: {}]
  %s2 = inlined_call_operand.vmem [shape: f32[1,256], index: 2, kind: input, shape index: {}]
  %s3 = inlined_call_operand.hbm [shape: bf16[256,128], index: 3, kind: input, shape index: {}]
  %s4 = inlined_call_operand.vmem [shape: f32[1,8], index: 4, kind: input, shape index: {}]
  %s5 = inlined_call_operand.hbm [shape: f32[8,8], index: 5, kind: output, shape index: {}]
  %s6 = sld [smem:[#allocation0]]
  $region42: #{tpu_custom_call.1} parent=0
    _
  %s8 = ssub.s32 1, %s6
  %s9 = scalar_select 0, %s8, %s6
  $region1: #{tpu_custom_call.1} parent=0
    #allocation2 [shape = 'u8[4096]{0}', space=vmem, size = 0x1000, scoped, tag = 'input window, operand 0, single buffered']
    #allocation3 [shape = 's32[1]{0}', space=sflag, size = 0x4, scoped, tag = 'scoped memory for tpu_custom_call.1']
    #allocation4 [shape = 's32[1]{0}', space=sflag, size = 0x4, scoped, tag = 'scoped memory for tpu_custom_call.1']
    #allocation5 [shape = 'u8[8192]{0}', space=vmem, size = 0x2000, scoped, tag = 'input window, operand 1, single buffered']
    #allocation6 [shape = 's32[1]{0}', space=sflag, size = 0x4, scoped, tag = 'scoped memory for tpu_custom_call.1']
    #allocation7 [shape = 'u8[65536]{0}', space=vmem, size = 0x10000, scoped, tag = 'input window, operand 3, single buffered']
    #allocation8 [shape = 'u8[4096]{0}', space=vmem, size = 0x1000, scoped, tag = 'output window, operand 0, single buffered']
    %10 = vsyncpa [#allocation3], 0
    %11 = vsyncpa [#allocation6], 0
    %12 = vsyncpa [#allocation4], 0
    // Predicated region
    $region2: #{tpu_custom_call.1} parent=1 // pred_check
      _
    $region3: #{tpu_custom_call.1} parent=1 // pred_check_branch
      %14 = sbr.rel (0) target = $region5
    $region4: #{tpu_custom_call.1} parent=1 // pred_region
      %s16 = ssub.s32 128, 128
      %17 = vsyncadd [#allocation3], %s16
      %s19 = sshll.u32 [#allocation2], 4
      %s20 = int_to_ptr.vmem [resolvable:$true] %s19
      %22 = dma.hbm_to_vmem [thread:$0]  %s0, 128, %s20, [#allocation3]
    $region5: #{tpu_custom_call.1} parent=1 // pred_fallthru
      _
    // Predicated region
    $region6: #{tpu_custom_call.1} parent=1 // pred_check
      _
    $region7: #{tpu_custom_call.1} parent=1 // pred_check_branch
      %24 = sbr.rel (0) target = $region9
    $region8: #{tpu_custom_call.1} parent=1 // pred_region
      %s26 = ssub.s32 256, 256
      %27 = vsyncadd [#allocation6], %s26
      %s28 = sshll.u32 [#allocation5], 4
      %s29 = int_to_ptr.vmem [resolvable:$true] %s28
      %34 = dma.hbm_to_vmem [thread:$0]  %s1, 256, %s29, [#allocation6], 128, 128, 8
    $region9: #{tpu_custom_call.1} parent=1 // pred_fallthru
      _
    // Predicated region
    $region10: #{tpu_custom_call.1} parent=1 // pred_check
      _
    $region11: #{tpu_custom_call.1} parent=1 // pred_check_branch
      %36 = sbr.rel (0) target = $region13
    $region12: #{tpu_custom_call.1} parent=1 // pred_region
      _
    $region13: #{tpu_custom_call.1} parent=1 // pred_fallthru
      _
    // Predicated region
    $region14: #{tpu_custom_call.1} parent=1 // pred_check
      _
    $region15: #{tpu_custom_call.1} parent=1 // pred_check_branch
      %38 = sbr.rel (0) target = $region17
    $region16: #{tpu_custom_call.1} parent=1 // pred_region
      %s40 = ssub.s32 2048, 2048
      %41 = vsyncadd [#allocation6], %s40
      %s42 = sshll.u32 [#allocation7], 4
      %s43 = int_to_ptr.vmem [resolvable:$true] %s42
      %48 = dma.hbm_to_vmem [thread:$0]  %s3, 2048, %s43, [#allocation6], 64, 64, 4
    $region17: #{tpu_custom_call.1} parent=1 // pred_fallthru
      _
    // Predicated region
    $region18: #{tpu_custom_call.1} parent=1 // pred_check
      _
    $region19: #{tpu_custom_call.1} parent=1 // pred_check_branch
      %50 = sbr.rel (0) target = $region21
    $region20: #{tpu_custom_call.1} parent=1 // pred_region
      _
    $region21: #{tpu_custom_call.1} parent=1 // pred_fallthru
      _
    // Predicated region
    $region22: #{tpu_custom_call.1} parent=1 // pred_check
      _
    $region23: #{tpu_custom_call.1} parent=1 // pred_check_branch
      %52 = sbr.rel (0) target = $region25
    $region24: #{tpu_custom_call.1} parent=1 // pred_region
      %53 = dma.done [#allocation3], 128
    $region25: #{tpu_custom_call.1} parent=1 // pred_fallthru
      _
    // Predicated region
    $region26: #{tpu_custom_call.1} parent=1 // pred_check
      _
    $region27: #{tpu_custom_call.1} parent=1 // pred_check_branch
      %55 = sbr.rel (0) target = $region29
    $region28: #{tpu_custom_call.1} parent=1 // pred_region
      %56 = dma.done [#allocation6], 256
    $region29: #{tpu_custom_call.1} parent=1 // pred_fallthru
      _
    // Predicated region
    $region30: #{tpu_custom_call.1} parent=1 // pred_check
      _
    $region31: #{tpu_custom_call.1} parent=1 // pred_check_branch
      %58 = sbr.rel (0) target = $region33
    $region32: #{tpu_custom_call.1} parent=1 // pred_region
      %59 = dma.done [#allocation6], 2048
    $region33: #{tpu_custom_call.1} parent=1 // pred_fallthru
      _
    %v61 = vld [vmem:[#allocation2] sm:$0xff]
    %v62 = vpack.c.bf16 %v61, %v61
    %v63 = vld [vmem:[#allocation5] sm:$0xff]
    %v64 = vld [vmem:[#allocation5 + $0x8] sm:$0xff]
    %v65 = vld [vmem:[%s2] sm:$0x3]
    %v67 = vlaneseq
    %v68 = vshrl.u32 %v67, 7
    %v69 = vsub.s32 0, %v68
    %v70 = vrot.slane %v65, %v69
    %v71 = vlaneseq
    %v72 = vshrl.u32 %v71, 7
    %v73 = vsub.s32 1, %v72
    %v74 = vrot.slane %v65, %v73
    %v79 = vunpack.c.l.b16 %v63
    %v80 = vunpack.c.h.b16 %v63
    %v81 = vunpack.c.l.b16 %v64
    %v82 = vunpack.c.h.b16 %v64
    %v83 = vpack.c.b16 %v81, %v79
    %v84 = vpack.c.b16 %v82, %v80
    %vm87 = vcmask 130048
    %v89 = vsel %vm87, %v62, 0
    %91 = vmatprep.subr.bf16.mxu0 0
    %92 = vmatpush1.bf16.msra.mxu0 0
    %93 = vmatprep.subr.bf16.mxu0 0
    %94 = vmatpush1.bf16.msra.mxu0 0
    %95 = vmatprep.subr.bf16.mxu0 0
    %96 = vmatpush1.bf16.msra.mxu0 0
    %97 = vmatprep.subr.bf16.mxu0 0
    %98 = vmatpush1.bf16.msra.mxu0 0
    %99 = vmatprep.subr.bf16.mxu0 0
    %100 = vmatpush1.bf16.msra.mxu0 0
    %101 = vmatprep.subr.bf16.mxu0 0
    %102 = vmatpush1.bf16.msra.mxu0 0
    %103 = vmatprep.subr.bf16.mxu0 0
    %104 = vmatpush1.bf16.msra.mxu0 0
    %105 = vmatprep.subr.bf16.mxu0 %v84
    %106 = vmatpush1.bf16.msra.mxu0 %v83
    %107 = vmatprep.subr.bf16.mxu0 0
    %108 = vmatpush2.bf16.msra.mxu0 0
    %109 = vmatprep.subr.bf16.mxu0 0
    %110 = vmatpush2.bf16.msra.mxu0 0
    %111 = vmatprep.subr.bf16.mxu0 0
    %112 = vmatpush2.bf16.msra.mxu0 0
    %113 = vmatprep.subr.bf16.mxu0 0
    %114 = vmatpush2.bf16.msra.mxu0 0
    %115 = vmatprep.subr.bf16.mxu0 0
    %116 = vmatpush2.bf16.msra.mxu0 0
    %117 = vmatprep.subr.bf16.mxu0 0
    %118 = vmatpush2.bf16.msra.mxu0 0
    %119 = vmatprep.subr.bf16.mxu0 0
    %120 = vmatpush2.bf16.msra.mxu0 0
    %121 = vmatprep.subr.bf16.mxu0 0
    %122 = vmatpush2.bf16.msra.mxu0 0
    %123 = vmatprep.mubr.bf16.mxu0 0
    %124 = vmatmul.mubr.bf16.gmra.mxu0 %v89
    %v125 = vpop.f32.mrf.mxu0
    %v126 = vadd.f32 %v70, %v125
    %v127 = vpop.f32.mrf.mxu0
    %v128 = vadd.f32 %v74, %v127
    %v129 = vpop.f32.mrf.mxu0
    %v130 = vpop.f32.mrf.mxu0
    %131 = vdwg.mxu0
    %v132 = vmax.f32 %v126, 0.0
    %v133 = vmax.f32 %v128, 0.0
    %v134 = vpack.c.bf16 %v132, %v132
    %v135 = vpack.c.bf16 %v133, %v133
    %v136 = vld [vmem:[#allocation7] sm:$0xf]
    %v137 = vld [vmem:[#allocation7 + $0x4] sm:$0xf]
    %v138 = vld [vmem:[#allocation7 + $0x8] sm:$0xf]
    %v139 = vld [vmem:[#allocation7 + $0xc] sm:$0xf]
    %v140 = vld [vmem:[#allocation7 + $0x10] sm:$0xf]
    %v141 = vld [vmem:[#allocation7 + $0x14] sm:$0xf]
    %v142 = vld [vmem:[#allocation7 + $0x18] sm:$0xf]
    %v143 = vld [vmem:[#allocation7 + $0x1c] sm:$0xf]
    %v144 = vld [vmem:[#allocation7 + $0x20] sm:$0xf]
    %v145 = vld [vmem:[#allocation7 + $0x24] sm:$0xf]
    %v146 = vld [vmem:[#allocation7 + $0x28] sm:$0xf]
    %v147 = vld [vmem:[#allocation7 + $0x2c] sm:$0xf]
    %v148 = vld [vmem:[#allocation7 + $0x30] sm:$0xf]
    %v149 = vld [vmem:[#allocation7 + $0x34] sm:$0xf]
    %v150 = vld [vmem:[#allocation7 + $0x38] sm:$0xf]
    %v151 = vld [vmem:[#allocation7 + $0x3c] sm:$0xf]
    %v152 = vld [vmem:[#allocation7 + $0x40] sm:$0xf]
    %v153 = vld [vmem:[#allocation7 + $0x44] sm:$0xf]
    %v154 = vld [vmem:[#allocation7 + $0x48] sm:$0xf]
    %v155 = vld [vmem:[#allocation7 + $0x4c] sm:$0xf]
    %v156 = vld [vmem:[#allocation7 + $0x50] sm:$0xf]
    %v157 = vld [vmem:[#allocation7 + $0x54] sm:$0xf]
    %v158 = vld [vmem:[#allocation7 + $0x58] sm:$0xf]
    %v159 = vld [vmem:[#allocation7 + $0x5c] sm:$0xf]
    %v160 = vld [vmem:[#allocation7 + $0x60] sm:$0xf]
    %v161 = vld [vmem:[#allocation7 + $0x64] sm:$0xf]
    %v162 = vld [vmem:[#allocation7 + $0x68] sm:$0xf]
    %v163 = vld [vmem:[#allocation7 + $0x6c] sm:$0xf]
    %v164 = vld [vmem:[#allocation7 + $0x70] sm:$0xf]
    %v165 = vld [vmem:[#allocation7 + $0x74] sm:$0xf]
    %v166 = vld [vmem:[#allocation7 + $0x78] sm:$0xf]
    %v167 = vld [vmem:[#allocation7 + $0x7c] sm:$0xf]
    %v200 = vunpack.c.l.b16 %v136
    %v201 = vunpack.c.l.b16 %v137
    %v202 = vunpack.c.l.b16 %v138
    %v203 = vunpack.c.l.b16 %v139
    %v204 = vunpack.c.l.b16 %v140
    %v205 = vunpack.c.l.b16 %v141
    %v206 = vunpack.c.l.b16 %v142
    %v207 = vunpack.c.l.b16 %v143
    %v208 = vunpack.c.l.b16 %v144
    %v209 = vunpack.c.l.b16 %v145
    %v210 = vunpack.c.l.b16 %v146
    %v211 = vunpack.c.l.b16 %v147
    %v212 = vunpack.c.l.b16 %v148
    %v213 = vunpack.c.l.b16 %v149
    %v214 = vunpack.c.l.b16 %v150
    %v215 = vunpack.c.l.b16 %v151
    %v216 = vunpack.c.l.b16 %v152
    %v217 = vunpack.c.l.b16 %v153
    %v218 = vunpack.c.l.b16 %v154
    %v219 = vunpack.c.l.b16 %v155
    %v220 = vunpack.c.l.b16 %v156
    %v221 = vunpack.c.l.b16 %v157
    %v222 = vunpack.c.l.b16 %v158
    %v223 = vunpack.c.l.b16 %v159
    %v224 = vunpack.c.l.b16 %v160
    %v225 = vunpack.c.l.b16 %v161
    %v226 = vunpack.c.l.b16 %v162
    %v227 = vunpack.c.l.b16 %v163
    %v228 = vunpack.c.l.b16 %v164
    %v229 = vunpack.c.l.b16 %v165
    %v230 = vunpack.c.l.b16 %v166
    %v231 = vunpack.c.l.b16 %v167
    %v232 = vpack.c.b16 %v201, %v200
    %v233 = vpack.c.b16 %v203, %v202
    %v234 = vpack.c.b16 %v205, %v204
    %v235 = vpack.c.b16 %v207, %v206
    %v236 = vpack.c.b16 %v209, %v208
    %v237 = vpack.c.b16 %v211, %v210
    %v238 = vpack.c.b16 %v213, %v212
    %v239 = vpack.c.b16 %v215, %v214
    %v240 = vpack.c.b16 %v217, %v216
    %v241 = vpack.c.b16 %v219, %v218
    %v242 = vpack.c.b16 %v221, %v220
    %v243 = vpack.c.b16 %v223, %v222
    %v244 = vpack.c.b16 %v225, %v224
    %v245 = vpack.c.b16 %v227, %v226
    %v246 = vpack.c.b16 %v229, %v228
    %v247 = vpack.c.b16 %v231, %v230
    %264 = vmatprep.subr.bf16.mxu0 0
    %265 = vmatpush1.bf16.msra.mxu0 %v239
    %266 = vmatprep.subr.bf16.mxu0 0
    %267 = vmatpush1.bf16.msra.mxu0 %v238
    %268 = vmatprep.subr.bf16.mxu0 0
    %269 = vmatpush1.bf16.msra.mxu0 %v237
    %270 = vmatprep.subr.bf16.mxu0 0
    %271 = vmatpush1.bf16.msra.mxu0 %v236
    %272 = vmatprep.subr.bf16.mxu0 0
    %273 = vmatpush1.bf16.msra.mxu0 %v235
    %274 = vmatprep.subr.bf16.mxu0 0
    %275 = vmatpush1.bf16.msra.mxu0 %v234
    %276 = vmatprep.subr.bf16.mxu0 0
    %277 = vmatpush1.bf16.msra.mxu0 %v233
    %278 = vmatprep.subr.bf16.mxu0 0
    %279 = vmatpush1.bf16.msra.mxu0 %v232
    %280 = vmatprep.subr.bf16.mxu0 0
    %281 = vmatpush2.bf16.msra.mxu0 %v247
    %282 = vmatprep.subr.bf16.mxu0 0
    %283 = vmatpush2.bf16.msra.mxu0 %v246
    %284 = vmatprep.subr.bf16.mxu0 0
    %285 = vmatpush2.bf16.msra.mxu0 %v245
    %286 = vmatprep.subr.bf16.mxu0 0
    %287 = vmatpush2.bf16.msra.mxu0 %v244
    %288 = vmatprep.subr.bf16.mxu0 0
    %289 = vmatpush2.bf16.msra.mxu0 %v243
    %290 = vmatprep.subr.bf16.mxu0 0
    %291 = vmatpush2.bf16.msra.mxu0 %v242
    %292 = vmatprep.subr.bf16.mxu0 0
    %293 = vmatpush2.bf16.msra.mxu0 %v241
    %294 = vmatprep.subr.bf16.mxu0 0
    %295 = vmatpush2.bf16.msra.mxu0 %v240
    %296 = vmatprep.mubr.bf16.mxu0 %v135
    %297 = vmatmul.mubr.bf16.gmra.mxu0 %v134
    %v298 = vpop.f32.mrf.mxu0
    %v299 = vadd.f32 0.0, %v298
    %v300 = vpop.f32.mrf.mxu0
    %v301 = vpop.f32.mrf.mxu0
    %v302 = vpop.f32.mrf.mxu0
    %303 = vdwg.mxu0
    %v304 = vld [vmem:[%s4] sm:$0x1]
    %v306 = vlaneseq
    %v307 = vshrl.u32 %v306, 7
    %v308 = vsub.s32 0, %v307
    %v309 = vrot.slane %v304, %v308
    %v311 = vadd.f32 %v299, %v309
    %vm312 = vcmask 64512
    %313 = vst.msk [vmem:[#allocation8] sm:$0xff] %vm312, %v311
    // Predicated region
    $region34: #{tpu_custom_call.1} parent=1 // pred_check
      _
    $region35: #{tpu_custom_call.1} parent=1 // pred_check_branch
      %315 = sbr.rel (0) target = $region37
    $region36: #{tpu_custom_call.1} parent=1 // pred_region
      %s317 = ssub.s32 128, 128
      %318 = vsyncadd [#allocation4], %s317
      %s320 = sshll.u32 [#allocation8], 4
      %s321 = int_to_ptr.vmem [resolvable:$true] %s320
      %323 = dma.vmem_to_hbm [thread:$0]  %s321, 128, %s5, [#allocation4]
    $region37: #{tpu_custom_call.1} parent=1 // pred_fallthru
      _
    // Predicated region
    $region38: #{tpu_custom_call.1} parent=1 // pred_check
      _
    $region39: #{tpu_custom_call.1} parent=1 // pred_check_branch
      %325 = sbr.rel (0) target = $region41
    $region40: #{tpu_custom_call.1} parent=1 // pred_region
      %326 = dma.done [#allocation4], 128
    $region41: #{tpu_custom_call.1} parent=1 // pred_fallthru
      _
    %327 = vsyncpa [#allocation3], 1
    %328 = vsyncpa [#allocation6], 1
    %329 = vsyncpa [#allocation4], 1

</llo_original>
